<compile_context>
chip_gen: v7x
topology: tpu7x:2x2x1
jax: 0.10.0
libtpu: 0.0.40
codegen_flags: <defaults>
</compile_context>

<pallas_src>
import functools

import jax
import jax.numpy as jnp
from jax import lax
from jax.experimental import pallas as pl
from jax.experimental.pallas import tpu as pltpu


def _bert_self_attention_kernel(
    x_ref,      # (1, S, H)   hidden states for batch b            (f32)
    wqkv_ref,   # (H, 3H)     fused [Wq.T/sqrt(d) | Wk.T | Wv.T]   (bf16)
    bqkv_ref,   # (1, 3H)     fused [bq/sqrt(d)   | bk   | bv  ]   (f32)
    mask_ref,   # (1, 1, S)   additive attention mask for batch b  (f32)
    o_ref,      # (1, S, H)   output, already in (B, S, H) layout
    *,
    num_heads: int,
    head_dim: int,
):
    H = num_heads * head_dim

    x = x_ref[0].astype(jnp.bfloat16)          # (S, H)  bf16 MXU operand
    w = wqkv_ref[...]                          # (H, 3H) bf16

    # Fused QKV projection: one full-width matmul, f32 accumulation, bias add.
    qkv = jnp.dot(x, w, preferred_element_type=jnp.float32) + bqkv_ref[...]  # (S, 3H) f32

    # Additive mask row, loaded once per batch and shared by all heads.
    mask_row = mask_ref[0]                     # (1, S) f32

    head_outs = []
    for h in range(num_heads):                 # static unroll over heads
        lo = h * head_dim
        q = qkv[:, lo:lo + head_dim]                      # (S, d), already scaled
        k = qkv[:, H + lo:H + lo + head_dim]              # (S, d)
        v = qkv[:, 2 * H + lo:2 * H + lo + head_dim]      # (S, d)

        # scores = q @ k^T, contracting last axes (no materialized transpose).
        scores = lax.dot_general(
            q.astype(jnp.bfloat16), k.astype(jnp.bfloat16),
            dimension_numbers=(((1,), (1,)), ((), ())),
            preferred_element_type=jnp.float32,
        )                                                  # (S, S) f32
        scores = scores + mask_row                         # broadcast (1, S)

        # Softmax in f32; EUP reciprocal instead of a full (S, S) divide.
        m = jnp.max(scores, axis=-1, keepdims=True)
        e = jnp.exp(scores - m)
        denom = jnp.sum(e, axis=-1, keepdims=True)
        probs = e * pl.reciprocal(denom, approx=True)

        # TODO(synk): nn.Dropout on attention probs is identity in eval mode;
        # training-time dropout (random masking) intentionally not implemented.

        out_h = jnp.dot(probs.astype(jnp.bfloat16), v.astype(jnp.bfloat16),
                        preferred_element_type=jnp.float32)  # (S, d)
        head_outs.append(out_h)

    # One lane-dense (S, H) store, directly in the final (B, S, H) layout
    # (matches transpose(1,2).contiguous().view(...) of the PyTorch module).
    o_ref[0] = jnp.concatenate(head_outs, axis=-1).astype(o_ref.dtype)


def bert_self_attention(hidden_states, attention_mask, params, num_heads):
    """hidden_states: [B, S, H]; attention_mask: [B, 1, 1, S] additive mask."""
    B, S, H = hidden_states.shape
    d = H // num_heads
    scale = 1.0 / jnp.sqrt(jnp.float32(d))

    # torch Linear computes x @ W.T + b with W of shape (out, in).
    # Fold the 1/sqrt(d) score scale into the query projection (weights + bias).
    wq = params["wq"].T * scale
    wk = params["wk"].T
    wv = params["wv"].T
    wqkv = jnp.concatenate([wq, wk, wv], axis=1).astype(jnp.bfloat16)      # (H, 3H)

    bq = params["bq"] * scale
    bqkv = jnp.concatenate([bq, params["bk"], params["bv"]]).reshape(1, 3 * H)
    bqkv = bqkv.astype(jnp.float32)

    mask = attention_mask.reshape(B, 1, S).astype(jnp.float32)

    kernel = functools.partial(
        _bert_self_attention_kernel, num_heads=num_heads, head_dim=d)

    return pl.pallas_call(
        kernel,
        out_shape=jax.ShapeDtypeStruct((B, S, H), hidden_states.dtype),
        grid_spec=pltpu.PrefetchScalarGridSpec(
            num_scalar_prefetch=0,
            grid=(B,),
            in_specs=[
                pl.BlockSpec((1, S, H), lambda b: (b, 0, 0)),        # x
                pl.BlockSpec((H, 3 * H), lambda b: (0, 0)),          # fused W (grid-invariant)
                pl.BlockSpec((1, 3 * H), lambda b: (0, 0)),          # fused bias
                pl.BlockSpec((1, 1, S), lambda b: (b, 0, 0)),        # mask
            ],
            out_specs=pl.BlockSpec((1, S, H), lambda b: (b, 0, 0)),  # (B, S, H) directly
        ),
        compiler_params=pltpu.CompilerParams(
            # Batch axis is parallel -> shards across the 2 TensorCores on v7x.
            dimension_semantics=("parallel",),
            # Explicit scoped-VMEM budget: safe on v5e (128 MiB phys),
            # v6e (128 MiB) and v7x (64 MiB).
            vmem_limit_bytes=32 * 1024 * 1024,
        ),
    )(hidden_states, wqkv, bqkv, mask)


def reference_self_attention(hidden_states, attention_mask, params, num_heads):
    B, S, H = hidden_states.shape
    d = H // num_heads

    def proj(w, b):
        p = hidden_states @ w.T + b                                  # (B, S, H)
        return p.reshape(B, S, num_heads, d).transpose(0, 2, 1, 3)   # (B, nH, S, d)

    q = proj(params["wq"], params["bq"])
    k = proj(params["wk"], params["bk"])
    v = proj(params["wv"], params["bv"])
    scores = jnp.einsum("bhqd,bhkd->bhqk", q, k) / jnp.sqrt(jnp.float32(d))
    scores = scores + attention_mask                                 # broadcast (B,1,1,S)
    probs = jax.nn.softmax(scores, axis=-1)
    out = jnp.einsum("bhqk,bhkd->bhqd", probs, v)
    return out.transpose(0, 2, 1, 3).reshape(B, S, H)


if __name__ == "__main__":
    B, S, H, NUM_HEADS = 2, 8, 32, 4

    key = jax.random.PRNGKey(0)
    k_x, k_wq, k_bq, k_wk, k_bk, k_wv, k_bv = jax.random.split(key, 7)

    hidden_states = jax.random.normal(k_x, (B, S, H), dtype=jnp.float32)

    params = {
        "wq": jax.random.normal(k_wq, (H, H), dtype=jnp.float32) * 0.05,
        "bq": jax.random.normal(k_bq, (H,), dtype=jnp.float32) * 0.05,
        "wk": jax.random.normal(k_wk, (H, H), dtype=jnp.float32) * 0.05,
        "bk": jax.random.normal(k_bk, (H,), dtype=jnp.float32) * 0.05,
        "wv": jax.random.normal(k_wv, (H, H), dtype=jnp.float32) * 0.05,
        "bv": jax.random.normal(k_bv, (H,), dtype=jnp.float32) * 0.05,
    }

    # Additive BERT-style mask: last 2 positions of batch 1 masked out.
    positions = jnp.arange(S)[None, None, None, :]
    valid_len = jnp.array([S, S - 2])[:, None, None, None]
    attention_mask = jnp.where(positions < valid_len, 0.0, -10000.0).astype(jnp.float32)

    out = bert_self_attention(hidden_states, attention_mask, params, NUM_HEADS)
    out = jax.block_until_ready(out)

    ref = reference_self_attention(hidden_states, attention_mask, params, NUM_HEADS)
    assert out.shape == (B, S, H)
    # bf16 MXU operands + approx reciprocal => relax tolerance vs the f32 reference.
    assert jnp.allclose(out, ref, atol=2e-2, rtol=2e-2), "mismatch vs reference"

    print("KERNEL_OK")
</pallas_src>

<mosaic_0001>
module attributes {stable_mosaic.version = 11 : i64} {
  func.func @_bert_self_attention_kernel(%arg0: i32, %arg1: memref<1x8x32xf32, #tpu.memory_space<vmem>>, %arg2: memref<32x96xbf16, #tpu.memory_space<vmem>>, %arg3: memref<1x96xf32, #tpu.memory_space<vmem>>, %arg4: memref<1x1x8xf32, #tpu.memory_space<vmem>>, %arg5: memref<1x8x32xf32, #tpu.memory_space<vmem>>) attributes {dimension_semantics = [#tpu.dimension_semantics<parallel>], iteration_bounds = array<i64: 2>, scalar_prefetch = 0 : i64, scratch_operands = 0 : i64, tpu.core_type = #tpu.core_type<tc>, window_params = [{transform_indices = @transform_0, window_bounds = array<i64: 1, 8, 32>}, {pipeline_mode = #tpu.pipeline_mode<synchronous>, transform_indices = @transform_1, window_bounds = array<i64: 32, 96>}, {pipeline_mode = #tpu.pipeline_mode<synchronous>, transform_indices = @transform_2, window_bounds = array<i64: 1, 96>}, {transform_indices = @transform_3, window_bounds = array<i64: 1, 1, 8>}, {transform_indices = @transform_4, window_bounds = array<i64: 1, 8, 32>}]} {
    %c0 = arith.constant 0 : index
    %c0_0 = arith.constant 0 : index
    %c0_1 = arith.constant 0 : index
    %0 = vector.load %arg1[%c0, %c0_0, %c0_1] : memref<1x8x32xf32, #tpu.memory_space<vmem>>, vector<1x8x32xf32>
    %1 = vector.shape_cast %0 : vector<1x8x32xf32> to vector<8x32xf32>
    %2 = arith.truncf %1 : vector<8x32xf32> to vector<8x32xbf16>
    %c0_2 = arith.constant 0 : index
    %c0_3 = arith.constant 0 : index
    %3 = vector.load %arg2[%c0_2, %c0_3] : memref<32x96xbf16, #tpu.memory_space<vmem>>, vector<32x96xbf16>
    %cst = arith.constant dense<0.000000e+00> : vector<8x96xf32>
    %4 = tpu.matmul %2, %3, %cst {dimension_numbers = #tpu.dot_dimension_numbers<[1], [0], [0], [1], [0, 0, 1, 1], [], []>} : vector<8x32xbf16>, vector<32x96xbf16>, vector<8x96xf32> -> vector<8x96xf32>
    %c0_4 = arith.constant 0 : index
    %c0_5 = arith.constant 0 : index
    %5 = vector.load %arg3[%c0_4, %c0_5] : memref<1x96xf32, #tpu.memory_space<vmem>>, vector<1x96xf32>
    %6 = vector.broadcast %5 : vector<1x96xf32> to vector<8x96xf32>
    %7 = arith.addf %4, %6 : vector<8x96xf32>
    %c0_6 = arith.constant 0 : index
    %c0_7 = arith.constant 0 : index
    %c0_8 = arith.constant 0 : index
    %8 = vector.load %arg4[%c0_6, %c0_7, %c0_8] : memref<1x1x8xf32, #tpu.memory_space<vmem>>, vector<1x1x8xf32>
    %9 = vector.shape_cast %8 : vector<1x1x8xf32> to vector<1x8xf32>
    %10 = vector.extract_strided_slice %7 {offsets = [0, 0], sizes = [8, 8], strides = [1, 1]} : vector<8x96xf32> to vector<8x8xf32>
    %11 = vector.extract_strided_slice %7 {offsets = [0, 32], sizes = [8, 8], strides = [1, 1]} : vector<8x96xf32> to vector<8x8xf32>
    %12 = vector.extract_strided_slice %7 {offsets = [0, 64], sizes = [8, 8], strides = [1, 1]} : vector<8x96xf32> to vector<8x8xf32>
    %13 = arith.truncf %10 : vector<8x8xf32> to vector<8x8xbf16>
    %14 = arith.truncf %11 : vector<8x8xf32> to vector<8x8xbf16>
    %cst_9 = arith.constant dense<0.000000e+00> : vector<8x8xf32>
    %15 = tpu.matmul %13, %14, %cst_9 {dimension_numbers = #tpu.dot_dimension_numbers<[1], [1], [0], [0], [0, 0, 1, 0], [], []>} : vector<8x8xbf16>, vector<8x8xbf16>, vector<8x8xf32> -> vector<8x8xf32>
    %16 = vector.broadcast %9 : vector<1x8xf32> to vector<8x8xf32>
    %17 = arith.addf %15, %16 : vector<8x8xf32>
    %cst_10 = arith.constant dense<0xFF800000> : vector<8xf32>
    %18 = vector.multi_reduction <maximumf>, %17, %cst_10 [1] : vector<8x8xf32> to vector<8xf32>
    %19 = vector.shape_cast %18 : vector<8xf32> to vector<8x1xf32>
    %20 = vector.broadcast %19 : vector<8x1xf32> to vector<8x8xf32>
    %21 = arith.subf %17, %20 : vector<8x8xf32>
    %22 = math.exp %21 : vector<8x8xf32>
    %cst_11 = arith.constant dense<0.000000e+00> : vector<8xf32>
    %23 = vector.multi_reduction <add>, %22, %cst_11 [1] : vector<8x8xf32> to vector<8xf32>
    %24 = vector.shape_cast %23 : vector<8xf32> to vector<8x1xf32>
    %25 = tpu.reciprocal %24 {approx = true} : vector<8x1xf32> -> vector<8x1xf32>
    %26 = vector.broadcast %25 : vector<8x1xf32> to vector<8x8xf32>
    %27 = arith.mulf %22, %26 : vector<8x8xf32>
    %28 = arith.truncf %27 : vector<8x8xf32> to vector<8x8xbf16>
    %29 = arith.truncf %12 : vector<8x8xf32> to vector<8x8xbf16>
    %cst_12 = arith.constant dense<0.000000e+00> : vector<8x8xf32>
    %30 = tpu.matmul %28, %29, %cst_12 {dimension_numbers = #tpu.dot_dimension_numbers<[1], [0], [0], [1], [0, 0, 1, 1], [], []>} : vector<8x8xbf16>, vector<8x8xbf16>, vector<8x8xf32> -> vector<8x8xf32>
    %31 = vector.extract_strided_slice %7 {offsets = [0, 8], sizes = [8, 8], strides = [1, 1]} : vector<8x96xf32> to vector<8x8xf32>
    %32 = vector.extract_strided_slice %7 {offsets = [0, 40], sizes = [8, 8], strides = [1, 1]} : vector<8x96xf32> to vector<8x8xf32>
    %33 = vector.extract_strided_slice %7 {offsets = [0, 72], sizes = [8, 8], strides = [1, 1]} : vector<8x96xf32> to vector<8x8xf32>
    %34 = arith.truncf %31 : vector<8x8xf32> to vector<8x8xbf16>
    %35 = arith.truncf %32 : vector<8x8xf32> to vector<8x8xbf16>
    %cst_13 = arith.constant dense<0.000000e+00> : vector<8x8xf32>
    %36 = tpu.matmul %34, %35, %cst_13 {dimension_numbers = #tpu.dot_dimension_numbers<[1], [1], [0], [0], [0, 0, 1, 0], [], []>} : vector<8x8xbf16>, vector<8x8xbf16>, vector<8x8xf32> -> vector<8x8xf32>
    %37 = vector.broadcast %9 : vector<1x8xf32> to vector<8x8xf32>
    %38 = arith.addf %36, %37 : vector<8x8xf32>
    %cst_14 = arith.constant dense<0xFF800000> : vector<8xf32>
    %39 = vector.multi_reduction <maximumf>, %38, %cst_14 [1] : vector<8x8xf32> to vector<8xf32>
    %40 = vector.shape_cast %39 : vector<8xf32> to vector<8x1xf32>
    %41 = vector.broadcast %40 : vector<8x1xf32> to vector<8x8xf32>
    %42 = arith.subf %38, %41 : vector<8x8xf32>
    %43 = math.exp %42 : vector<8x8xf32>
    %cst_15 = arith.constant dense<0.000000e+00> : vector<8xf32>
    %44 = vector.multi_reduction <add>, %43, %cst_15 [1] : vector<8x8xf32> to vector<8xf32>
    %45 = vector.shape_cast %44 : vector<8xf32> to vector<8x1xf32>
    %46 = tpu.reciprocal %45 {approx = true} : vector<8x1xf32> -> vector<8x1xf32>
    %47 = vector.broadcast %46 : vector<8x1xf32> to vector<8x8xf32>
    %48 = arith.mulf %43, %47 : vector<8x8xf32>
    %49 = arith.truncf %48 : vector<8x8xf32> to vector<8x8xbf16>
    %50 = arith.truncf %33 : vector<8x8xf32> to vector<8x8xbf16>
    %cst_16 = arith.constant dense<0.000000e+00> : vector<8x8xf32>
    %51 = tpu.matmul %49, %50, %cst_16 {dimension_numbers = #tpu.dot_dimension_numbers<[1], [0], [0], [1], [0, 0, 1, 1], [], []>} : vector<8x8xbf16>, vector<8x8xbf16>, vector<8x8xf32> -> vector<8x8xf32>
    %52 = vector.extract_strided_slice %7 {offsets = [0, 16], sizes = [8, 8], strides = [1, 1]} : vector<8x96xf32> to vector<8x8xf32>
    %53 = vector.extract_strided_slice %7 {offsets = [0, 48], sizes = [8, 8], strides = [1, 1]} : vector<8x96xf32> to vector<8x8xf32>
    %54 = vector.extract_strided_slice %7 {offsets = [0, 80], sizes = [8, 8], strides = [1, 1]} : vector<8x96xf32> to vector<8x8xf32>
    %55 = arith.truncf %52 : vector<8x8xf32> to vector<8x8xbf16>
    %56 = arith.truncf %53 : vector<8x8xf32> to vector<8x8xbf16>
    %cst_17 = arith.constant dense<0.000000e+00> : vector<8x8xf32>
    %57 = tpu.matmul %55, %56, %cst_17 {dimension_numbers = #tpu.dot_dimension_numbers<[1], [1], [0], [0], [0, 0, 1, 0], [], []>} : vector<8x8xbf16>, vector<8x8xbf16>, vector<8x8xf32> -> vector<8x8xf32>
    %58 = vector.broadcast %9 : vector<1x8xf32> to vector<8x8xf32>
    %59 = arith.addf %57, %58 : vector<8x8xf32>
    %cst_18 = arith.constant dense<0xFF800000> : vector<8xf32>
    %60 = vector.multi_reduction <maximumf>, %59, %cst_18 [1] : vector<8x8xf32> to vector<8xf32>
    %61 = vector.shape_cast %60 : vector<8xf32> to vector<8x1xf32>
    %62 = vector.broadcast %61 : vector<8x1xf32> to vector<8x8xf32>
    %63 = arith.subf %59, %62 : vector<8x8xf32>
    %64 = math.exp %63 : vector<8x8xf32>
    %cst_19 = arith.constant dense<0.000000e+00> : vector<8xf32>
    %65 = vector.multi_reduction <add>, %64, %cst_19 [1] : vector<8x8xf32> to vector<8xf32>
    %66 = vector.shape_cast %65 : vector<8xf32> to vector<8x1xf32>
    %67 = tpu.reciprocal %66 {approx = true} : vector<8x1xf32> -> vector<8x1xf32>
    %68 = vector.broadcast %67 : vector<8x1xf32> to vector<8x8xf32>
    %69 = arith.mulf %64, %68 : vector<8x8xf32>
    %70 = arith.truncf %69 : vector<8x8xf32> to vector<8x8xbf16>
    %71 = arith.truncf %54 : vector<8x8xf32> to vector<8x8xbf16>
    %cst_20 = arith.constant dense<0.000000e+00> : vector<8x8xf32>
    %72 = tpu.matmul %70, %71, %cst_20 {dimension_numbers = #tpu.dot_dimension_numbers<[1], [0], [0], [1], [0, 0, 1, 1], [], []>} : vector<8x8xbf16>, vector<8x8xbf16>, vector<8x8xf32> -> vector<8x8xf32>
    %73 = vector.extract_strided_slice %7 {offsets = [0, 24], sizes = [8, 8], strides = [1, 1]} : vector<8x96xf32> to vector<8x8xf32>
    %74 = vector.extract_strided_slice %7 {offsets = [0, 56], sizes = [8, 8], strides = [1, 1]} : vector<8x96xf32> to vector<8x8xf32>
    %75 = vector.extract_strided_slice %7 {offsets = [0, 88], sizes = [8, 8], strides = [1, 1]} : vector<8x96xf32> to vector<8x8xf32>
    %76 = arith.truncf %73 : vector<8x8xf32> to vector<8x8xbf16>
    %77 = arith.truncf %74 : vector<8x8xf32> to vector<8x8xbf16>
    %cst_21 = arith.constant dense<0.000000e+00> : vector<8x8xf32>
    %78 = tpu.matmul %76, %77, %cst_21 {dimension_numbers = #tpu.dot_dimension_numbers<[1], [1], [0], [0], [0, 0, 1, 0], [], []>} : vector<8x8xbf16>, vector<8x8xbf16>, vector<8x8xf32> -> vector<8x8xf32>
    %79 = vector.broadcast %9 : vector<1x8xf32> to vector<8x8xf32>
    %80 = arith.addf %78, %79 : vector<8x8xf32>
    %cst_22 = arith.constant dense<0xFF800000> : vector<8xf32>
    %81 = vector.multi_reduction <maximumf>, %80, %cst_22 [1] : vector<8x8xf32> to vector<8xf32>
    %82 = vector.shape_cast %81 : vector<8xf32> to vector<8x1xf32>
    %83 = vector.broadcast %82 : vector<8x1xf32> to vector<8x8xf32>
    %84 = arith.subf %80, %83 : vector<8x8xf32>
    %85 = math.exp %84 : vector<8x8xf32>
    %cst_23 = arith.constant dense<0.000000e+00> : vector<8xf32>
    %86 = vector.multi_reduction <add>, %85, %cst_23 [1] : vector<8x8xf32> to vector<8xf32>
    %87 = vector.shape_cast %86 : vector<8xf32> to vector<8x1xf32>
    %88 = tpu.reciprocal %87 {approx = true} : vector<8x1xf32> -> vector<8x1xf32>
    %89 = vector.broadcast %88 : vector<8x1xf32> to vector<8x8xf32>
    %90 = arith.mulf %85, %89 : vector<8x8xf32>
    %91 = arith.truncf %90 : vector<8x8xf32> to vector<8x8xbf16>
    %92 = arith.truncf %75 : vector<8x8xf32> to vector<8x8xbf16>
    %cst_24 = arith.constant dense<0.000000e+00> : vector<8x8xf32>
    %93 = tpu.matmul %91, %92, %cst_24 {dimension_numbers = #tpu.dot_dimension_numbers<[1], [0], [0], [1], [0, 0, 1, 1], [], []>} : vector<8x8xbf16>, vector<8x8xbf16>, vector<8x8xf32> -> vector<8x8xf32>
    %94 = tpu.concatenate %30, %51, %72, %93 in 1 : vector<8x8xf32>, vector<8x8xf32>, vector<8x8xf32>, vector<8x8xf32> -> vector<8x32xf32>
    %c0_25 = arith.constant 0 : index
    %c0_26 = arith.constant 0 : index
    %c0_27 = arith.constant 0 : index
    %95 = vector.load %arg5[%c0_25, %c0_26, %c0_27] : memref<1x8x32xf32, #tpu.memory_space<vmem>>, vector<1x8x32xf32>
    %96 = vector.shape_cast %95 : vector<1x8x32xf32> to vector<8x32xf32>
    %97 = vector.shape_cast %94 : vector<8x32xf32> to vector<1x8x32xf32>
    tpu.vector_store %arg5[%c0_25, %c0_26, %c0_27], %97 {strides = array<i32>} : memref<1x8x32xf32, #tpu.memory_space<vmem>>, vector<1x8x32xf32>,
    return
  }
  func.func @transform_0(%arg0: i32) -> (i32, i32, i32) {
    %c0_i32 = arith.constant 0 : i32
    %c0_i32_0 = arith.constant 0 : i32
    %c0_i32_1 = arith.constant 0 : i32
    return %arg0, %c0_i32, %c0_i32_0 : i32, i32, i32
  }
  func.func @transform_1(%arg0: i32) -> (i32, i32) {
    %c0_i32 = arith.constant 0 : i32
    %c0_i32_0 = arith.constant 0 : i32
    %c0_i32_1 = arith.constant 0 : i32
    return %c0_i32, %c0_i32_0 : i32, i32
  }
  func.func @transform_2(%arg0: i32) -> (i32, i32) {
    %c0_i32 = arith.constant 0 : i32
    %c0_i32_0 = arith.constant 0 : i32
    %c0_i32_1 = arith.constant 0 : i32
    return %c0_i32, %c0_i32_0 : i32, i32
  }
  func.func @transform_3(%arg0: i32) -> (i32, i32, i32) {
    %c0_i32 = arith.constant 0 : i32
    %c0_i32_0 = arith.constant 0 : i32
    %c0_i32_1 = arith.constant 0 : i32
    return %arg0, %c0_i32, %c0_i32_0 : i32, i32, i32
  }
  func.func @transform_4(%arg0: i32) -> (i32, i32, i32) {
    %c0_i32 = arith.constant 0 : i32
    %c0_i32_0 = arith.constant 0 : i32
    %c0_i32_1 = arith.constant 0 : i32
    return %arg0, %c0_i32, %c0_i32_0 : i32, i32, i32
  }
}

</mosaic_0001>

<llo_original>
// kernel: tpu_custom_call.1
$region0: #{tpu_custom_call.1}
  #allocation0 [shape = 'u32[]', space=smem, size = 0x4, offset = 0x4, fixed_abs, tag = 'smem constant byte address 0x4 - core index']
  #allocation1 [shape = 'u32[144,128]{1,0:T(1,128)}', space=vmem, size = 0x12000, scoped, tag = 'internal scratch']
  %s0 = inlined_call_operand.hbm [shape: f32[2,8,32], index: 0, kind: input, shape index: {}]
  %s1 = inlined_call_operand.hbm [shape: bf16[32,96], index: 1, kind: input, shape index: {}]
  %s2 = inlined_call_operand.vmem [shape: f32[1,96], index: 2, kind: input, shape index: {}]
  %s3 = inlined_call_operand.vmem [shape: f32[2,1,8], index: 3, kind: input, shape index: {}]
  %s4 = inlined_call_operand.hbm [shape: f32[2,8,32], index: 4, kind: output, shape index: {}]
  %s5 = sld [smem:[#allocation0]]
  $region57: #{tpu_custom_call.1} parent=0
    _
  %s7 = ssub.s32 1, %s5
  %s8 = scalar_select 0, %s7, %s5
  $region1: #{tpu_custom_call.1} parent=0
    #allocation2 [shape = 'u8[8192]{0}', space=vmem, size = 0x2000, scoped, tag = 'input window, operand 0']
    #allocation3 [shape = 's32[2]{0}', space=sflag, size = 0x8, scoped, tag = 'scoped memory for tpu_custom_call.1']
    #allocation4 [shape = 's32[2]{0}', space=sflag, size = 0x8, scoped, tag = 'scoped memory for tpu_custom_call.1']
    #allocation5 [shape = 'u8[8192]{0}', space=vmem, size = 0x2000, scoped, tag = 'input window, operand 1, single buffered']
    #allocation6 [shape = 's32[1]{0}', space=sflag, size = 0x4, scoped, tag = 'scoped memory for tpu_custom_call.1']
    #allocation7 [shape = 'u8[8192]{0}', space=vmem, size = 0x2000, scoped, tag = 'output window, operand 0']
    %9 = vsyncpa [#allocation3], 0
    %s10 = scalar_lea.sflag [#allocation3], 1
    %11 = vsyncpa %s10, 0
    %12 = vsyncpa [#allocation6], 0
    %13 = vsyncpa [#allocation4], 0
    %s14 = scalar_lea.sflag [#allocation4], 1
    %15 = vsyncpa %s14, 0
    loop: start=0, step=1, limit=4
    $region2: #{tpu_custom_call.1} parent=1 // loop_pre_header
      _
    $region3: #{tpu_custom_call.1} parent=1 // loop_header
      %s17 = sphi 0, %s21
      %p18 = scmp.ge.s32.totalorder %s17, 4
      %s27 = sphi 0, %s29
      %s30 = sphi 0, %s27
      %s31 = sphi 0, %s30
      %s47 = sphi 0, %s31
      %s51 = sphi 0, %s51
      %s53 = sphi 0, %s51
      %s54 = sphi 0, %s53
      %s68 = sphi 0, %s54
      %s72 = sphi 0, %s72
      %s74 = sphi 0, %s72
      %s75 = sphi 0, %s74
      %s89 = sphi 0, %s75
      %s95 = sphi 0, %s97
      %s98 = sphi 0, %s95
      %s99 = sphi 0, %s98
      %s115 = sphi 0, %s99
      %s121 = sphi 0, %s123
      %s124 = sphi 0, %s121
      %s125 = sphi 0, %s124
      %s141 = sphi 0, %s125
    $region4: #{tpu_custom_call.1} parent=1 // loop_header_branch
      %20 = sbr.rel (%p18) target = $region8
    $region5: #{tpu_custom_call.1} parent=1 // loop_body
      %s22 = ssub.s32 %s17, 1
      %s23 = ssub.s32 %s17, 2
      %s24 = sadd.s32 %s17, 1
      %s25 = ssub.s32 %s17, %s24
      %p26 = scmp.eq.s32.totalorder %s25, 0
      %s28 = sadd.s32 %s27, 1
      %s29 = scalar_select %p26, %s27, %s28
      %p32 = pneg %p26
      %p33 = scmp.eq.s32.totalorder %s17, 1
      %p34 = por %p32, %p33
      %p35 = scmp.ne.s32.totalorder %s27, %s30
      %p36 = scmp.eq.s32.totalorder %s17, 0
      %p37 = por %p35, %p36
      %p38 = scmp.ne.s32.totalorder %s27, %s30
      %p39 = scmp.eq.s32.totalorder %s22, 1
      %p40 = por %p38, %p39
      %p41 = scmp.ne.s32.totalorder %s30, %s31
      %p42 = scmp.eq.s32.totalorder %s22, 0
      %p43 = por %p41, %p42
      %p44 = scmp.ne.s32.totalorder %s30, %s31
      %p45 = scmp.eq.s32.totalorder %s23, 1
      %p46 = por %p44, %p45
      %p48 = scmp.ne.s32.totalorder %s31, %s47
      %p49 = scmp.eq.s32.totalorder %s23, 0
      %p50 = por %p48, %p49
      %s52 = sadd.s32 %s51, 1
      %p55 = scmp.eq.s32.totalorder %s17, 1
      %p56 = scmp.ne.s32.totalorder %s51, %s53
      %p57 = scmp.eq.s32.totalorder %s17, 0
      %p58 = por %p56, %p57
      %p59 = scmp.ne.s32.totalorder %s51, %s53
      %p60 = scmp.eq.s32.totalorder %s22, 1
      %p61 = por %p59, %p60
      %p62 = scmp.ne.s32.totalorder %s53, %s54
      %p63 = scmp.eq.s32.totalorder %s22, 0
      %p64 = por %p62, %p63
      %p65 = scmp.ne.s32.totalorder %s53, %s54
      %p66 = scmp.eq.s32.totalorder %s23, 1
      %p67 = por %p65, %p66
      %p69 = scmp.ne.s32.totalorder %s54, %s68
      %p70 = scmp.eq.s32.totalorder %s23, 0
      %p71 = por %p69, %p70
      %s73 = sadd.s32 %s72, 1
      %p76 = scmp.eq.s32.totalorder %s17, 1
      %p77 = scmp.ne.s32.totalorder %s72, %s74
      %p78 = scmp.eq.s32.totalorder %s17, 0
      %p79 = por %p77, %p78
      %p80 = scmp.ne.s32.totalorder %s72, %s74
      %p81 = scmp.eq.s32.totalorder %s22, 1
      %p82 = por %p80, %p81
      %p83 = scmp.ne.s32.totalorder %s74, %s75
      %p84 = scmp.eq.s32.totalorder %s22, 0
      %p85 = por %p83, %p84
      %p86 = scmp.ne.s32.totalorder %s74, %s75
      %p87 = scmp.eq.s32.totalorder %s23, 1
      %p88 = por %p86, %p87
      %p90 = scmp.ne.s32.totalorder %s75, %s89
      %p91 = scmp.eq.s32.totalorder %s23, 0
      %p92 = por %p90, %p91
      %s93 = ssub.s32 %s17, %s24
      %p94 = scmp.eq.s32.totalorder %s93, 0
      %s96 = sadd.s32 %s95, 1
      %s97 = scalar_select %p94, %s95, %s96
      %p100 = pneg %p94
      %p101 = scmp.eq.s32.totalorder %s17, 1
      %p102 = por %p100, %p101
      %p103 = scmp.ne.s32.totalorder %s95, %s98
      %p104 = scmp.eq.s32.totalorder %s17, 0
      %p105 = por %p103, %p104
      %p106 = scmp.ne.s32.totalorder %s95, %s98
      %p107 = scmp.eq.s32.totalorder %s22, 1
      %p108 = por %p106, %p107
      %p109 = scmp.ne.s32.totalorder %s98, %s99
      %p110 = scmp.eq.s32.totalorder %s22, 0
      %p111 = por %p109, %p110
      %p112 = scmp.ne.s32.totalorder %s98, %s99
      %p113 = scmp.eq.s32.totalorder %s23, 1
      %p114 = por %p112, %p113
      %p116 = scmp.ne.s32.totalorder %s99, %s115
      %p117 = scmp.eq.s32.totalorder %s23, 0
      %p118 = por %p116, %p117
      %s119 = ssub.s32 %s17, %s24
      %p120 = scmp.eq.s32.totalorder %s119, 0
      %s122 = sadd.s32 %s121, 1
      %s123 = scalar_select %p120, %s121, %s122
      %p126 = pneg %p120
      %p127 = scmp.eq.s32.totalorder %s17, 1
      %p128 = por %p126, %p127
      %p129 = scmp.ne.s32.totalorder %s121, %s124
      %p130 = scmp.eq.s32.totalorder %s17, 0
      %p131 = por %p129, %p130
      %p132 = scmp.ne.s32.totalorder %s121, %s124
      %p133 = scmp.eq.s32.totalorder %s22, 1
      %p134 = por %p132, %p133
      %p135 = scmp.ne.s32.totalorder %s124, %s125
      %p136 = scmp.eq.s32.totalorder %s22, 0
      %p137 = por %p135, %p136
      %p138 = scmp.ne.s32.totalorder %s124, %s125
      %p139 = scmp.eq.s32.totalorder %s23, 1
      %p140 = por %p138, %p139
      %p142 = scmp.ne.s32.totalorder %s125, %s141
      %p143 = scmp.eq.s32.totalorder %s23, 0
      %p144 = por %p142, %p143
      %p145 = scmp.le.s32.totalorder 1, %s17
      %p146 = scmp.lt.s32.totalorder %s17, 3
      %p147 = pnand %p145, %p146
      %p148 = pneg %p147
      // Predicated region
      $region9: #{tpu_custom_call.1} parent=5 // pred_check
        _
      $region10: #{tpu_custom_call.1} parent=5 // pred_check_branch
        %150 = sbr.rel (%p147) target = $region12
      $region11: #{tpu_custom_call.1} parent=5 // pred_region
        %s151 = ssub.s32 %s17, 1
        // Predicated region
        $region13: #{tpu_custom_call.1} parent=11 // pred_check
          %p152 = pneg %p64
        $region14: #{tpu_custom_call.1} parent=11 // pred_check_branch
          %154 = sbr.rel (%p152) target = $region16
        $region15: #{tpu_custom_call.1} parent=11 // pred_region
          %s156 = ssub.s32 256, 256
          %157 = vsyncadd [#allocation6], %s156
          %s158 = sshll.u32 [#allocation5], 4
          %s159 = int_to_ptr.vmem [resolvable:$true] %s158
          %164 = dma.hbm_to_vmem [thread:$0]  %s1, 256, %s159, [#allocation6], 64, 64, 4
        $region16: #{tpu_custom_call.1} parent=11 // pred_fallthru
          _
        // Predicated region
        $region17: #{tpu_custom_call.1} parent=11 // pred_check
          %p165 = pneg %p85
        $region18: #{tpu_custom_call.1} parent=11 // pred_check_branch
          %167 = sbr.rel (%p165) target = $region20
        $region19: #{tpu_custom_call.1} parent=11 // pred_region
          _
        $region20: #{tpu_custom_call.1} parent=11 // pred_fallthru
          _
      $region12: #{tpu_custom_call.1} parent=5 // pred_fallthru
        _
      %p168 = scmp.lt.s32.totalorder %s17, 2
      // Predicated region
      $region21: #{tpu_custom_call.1} parent=5 // pred_check
        %p169 = pneg %p168
      $region22: #{tpu_custom_call.1} parent=5 // pred_check_branch
        %171 = sbr.rel (%p169) target = $region24
      $region23: #{tpu_custom_call.1} parent=5 // pred_region
        // Predicated region
        $region25: #{tpu_custom_call.1} parent=23 // pred_check
          %p172 = pneg %p37
        $region26: #{tpu_custom_call.1} parent=23 // pred_check_branch
          %174 = sbr.rel (%p172) target = $region28
        $region27: #{tpu_custom_call.1} parent=23 // pred_region
          %s175 = sand.u32 %s27, 1
          %s176 = scalar_lea.sflag [#allocation3], %s175
          %s177 = sand.u32 %s27, 1
          %s178 = smul.addr %s177, 8
          %s179 = scalar_lea.vmem [#allocation2], %s178
          %s181 = ssub.s32 128, 128
          %182 = vsyncadd %s176, %s181
          %s183 = smul.addr %s17, 128
          %s184 = scalar_lea.hbm %s0, %s183
          %s186 = sshll.u32 %s179, 4
          %s187 = int_to_ptr.vmem [resolvable:$true] %s186
          %189 = dma.hbm_to_vmem [thread:$0]  %s184, 128, %s187, %s176
        $region28: #{tpu_custom_call.1} parent=23 // pred_fallthru
          _
        // Predicated region
        $region29: #{tpu_custom_call.1} parent=23 // pred_check
          %p190 = pneg %p105
        $region30: #{tpu_custom_call.1} parent=23 // pred_check_branch
          %192 = sbr.rel (%p190) target = $region32
        $region31: #{tpu_custom_call.1} parent=23 // pred_region
          %p193 = scmp.lt.s32.totalorder %s17, 1
          %s194 = scalar_select %p193, %s17, 1
          %s195 = scalar_lea.vmem %s3, %s194
        $region32: #{tpu_custom_call.1} parent=23 // pred_fallthru
          _
      $region24: #{tpu_custom_call.1} parent=5 // pred_fallthru
        _
      %p196 = scmp.le.s32.totalorder 1, %s17
      %p197 = scmp.lt.s32.totalorder %s17, 3
      %p198 = pnand %p196, %p197
      %p199 = pneg %p198
      // Predicated region
      $region33: #{tpu_custom_call.1} parent=5 // pred_check
        _
      $region34: #{tpu_custom_call.1} parent=5 // pred_check_branch
        %201 = sbr.rel (%p198) target = $region36
      $region35: #{tpu_custom_call.1} parent=5 // pred_region
        %s202 = ssub.s32 %s17, 1
        %s203 = sand.u32 %s30, 1
        %s204 = scalar_lea.sflag [#allocation3], %s203
        %s205 = sand.u32 %s30, 1
        %s206 = smul.addr %s205, 8
        %s207 = scalar_lea.vmem [#allocation2], %s206
        // Predicated region
        $region37: #{tpu_custom_call.1} parent=35 // pred_check
          %p208 = pneg %p43
        $region38: #{tpu_custom_call.1} parent=35 // pred_check_branch
          %210 = sbr.rel (%p208) target = $region40
        $region39: #{tpu_custom_call.1} parent=35 // pred_region
          %211 = dma.done %s204, 128
        $region40: #{tpu_custom_call.1} parent=35 // pred_fallthru
          _
        // Predicated region
        $region41: #{tpu_custom_call.1} parent=35 // pred_check
          %p212 = pneg %p64
        $region42: #{tpu_custom_call.1} parent=35 // pred_check_branch
          %214 = sbr.rel (%p212) target = $region44
        $region43: #{tpu_custom_call.1} parent=35 // pred_region
          %215 = dma.done [#allocation6], 256
        $region44: #{tpu_custom_call.1} parent=35 // pred_fallthru
          _
        %s216 = sand.u32 %s30, 1
        %s217 = scalar_lea.sflag [#allocation3], %s216
        %s218 = sand.u32 %s30, 1
        %s219 = smul.addr %s218, 8
        %s220 = scalar_lea.vmem [#allocation2], %s219
        %p221 = pneg %p43
        %p222 = pneg %p40
        %p223 = pneg %p64
        %p224 = pneg %p61
        %p225 = pneg %p85
        %p226 = pneg %p82
        %p227 = scmp.lt.s32.totalorder %s22, 1
        %s228 = scalar_select %p227, %s22, 1
        %s229 = scalar_lea.vmem %s3, %s228
        %p230 = pneg %p111
        %p231 = pneg %p108
        %p232 = pneg %p137
        %p233 = pneg %p134
        %s234 = sand.u32 %s124, 1
        %s235 = scalar_lea.sflag [#allocation4], %s234
        %s236 = sand.u32 %s124, 1
        %s237 = smul.addr %s236, 8
        %s238 = scalar_lea.vmem [#allocation7], %s237
        %p239 = scmp.lt.s32.totalorder %s22, 1
        %s240 = scalar_select %p239, %s22, 1
        %s241 = scalar_lea.vmem %s3, %s240
        %v243 = vld [vmem:[%s207] sm:$0xff]
        %v244 = vpack.c.bf16 %v243, %v243
        %v245 = vld [vmem:[#allocation5] sm:$0xf]
        %v246 = vld [vmem:[#allocation5 + $0x4] sm:$0xf]
        %v247 = vld [vmem:[#allocation5 + $0x8] sm:$0xf]
        %v248 = vld [vmem:[#allocation5 + $0xc] sm:$0xf]
        %v249 = vld [vmem:[%s2] sm:$0x1]
        %v251 = vlaneseq
        %v252 = vshrl.u32 %v251, 7
        %v253 = vsub.s32 0, %v252
        %v254 = vrot.slane %v249, %v253
        %v260 = vunpack.c.l.b16 %v245
        %v261 = vunpack.c.l.b16 %v246
        %v262 = vunpack.c.l.b16 %v247
        %v263 = vunpack.c.l.b16 %v248
        %v264 = vpack.c.b16 %v261, %v260
        %v265 = vpack.c.b16 %v263, %v262
        %vm268 = vcmask 261120
        %v270 = vsel %vm268, %v244, 0
        %272 = vmatprep.subr.bf16.mxu0 0
        %273 = vmatpush1.bf16.msra.mxu0 %v264
        %274 = vmatprep.subr.bf16.mxu0 0
        %275 = vmatpush1.bf16.msra.mxu0 %v265
        %276 = vmatprep.subr.bf16.mxu0 0
        %277 = vmatpush1.bf16.msra.mxu0 0
        %278 = vmatprep.subr.bf16.mxu0 0
        %279 = vmatpush1.bf16.msra.mxu0 0
        %280 = vmatprep.subr.bf16.mxu0 0
        %281 = vmatpush1.bf16.msra.mxu0 0
        %282 = vmatprep.subr.bf16.mxu0 0
        %283 = vmatpush1.bf16.msra.mxu0 0
        %284 = vmatprep.subr.bf16.mxu0 0
        %285 = vmatpush1.bf16.msra.mxu0 0
        %286 = vmatprep.subr.bf16.mxu0 0
        %287 = vmatpush1.bf16.msra.mxu0 0
        %288 = vmatprep.subr.bf16.mxu0 0
        %289 = vmatpush1.bf16.msra.mxu0 0
        %290 = vmatprep.subr.bf16.mxu0 0
        %291 = vmatpush1.bf16.msra.mxu0 0
        %292 = vmatprep.subr.bf16.mxu0 0
        %293 = vmatpush1.bf16.msra.mxu0 0
        %294 = vmatprep.subr.bf16.mxu0 0
        %295 = vmatpush1.bf16.msra.mxu0 0
        %296 = vmatprep.subr.bf16.mxu0 0
        %297 = vmatpush1.bf16.msra.mxu0 0
        %298 = vmatprep.subr.bf16.mxu0 0
        %299 = vmatpush1.bf16.msra.mxu0 0
        %300 = vmatprep.subr.bf16.mxu0 0
        %301 = vmatpush1.bf16.msra.mxu0 0
        %302 = vmatprep.subr.bf16.mxu0 0
        %303 = vmatpush1.bf16.msra.mxu0 0
        %304 = vmatprep.mubr.bf16.mxu0 0
        %305 = vmatmul.mubr.bf16.gmra.mrb[0].mxu0 %v270
        %v306 = vpop.f32.mrb[0].mxu0
        %v307 = vadd.f32 %v254, %v306
        %v308 = vpop.f32.mrb[0].mxu0
        %v309 = vpop.f32.mrb[0].mxu0
        %v310 = vpop.f32.mrb[0].mxu0
        %311 = vdwg.mxu0
        %v312 = vld [vmem:[%s241] sm:$0x1]
        %v313 = vpack.c.bf16 %v307, %v307
        %v315 = vlaneseq
        %v316 = vshrl.u32 %v315, 7
        %v317 = vsub.s32 0, %v316
        %v318 = vrot.slane %v312, %v317
        %321 = vrot.lane.b32.xlu0 %v313, 96
        %v322 = vpop.permute.xlu0 %321
        %vm323 = vcmask 64512
        %v325 = vsel %vm323, %v313, 0
        %v328 = vsel %vm323, %v322, 0
        %330 = vmatprep.subr.bf16.mxu0 0
        %331 = vmatpush1.bf16.xpose.msra.mxu0 %v328
        %332 = vmatprep.subr.bf16.mxu0 0
        %333 = vmatpush1.bf16.xpose.msra.mxu0 0
        %334 = vmatprep.subr.bf16.mxu0 0
        %335 = vmatpush1.bf16.xpose.msra.mxu0 0
        %336 = vmatprep.subr.bf16.mxu0 0
        %337 = vmatpush1.bf16.xpose.msra.mxu0 0
        %338 = vmatprep.subr.bf16.mxu0 0
        %339 = vmatpush1.bf16.xpose.msra.mxu0 0
        %340 = vmatprep.subr.bf16.mxu0 0
        %341 = vmatpush1.bf16.xpose.msra.mxu0 0
        %342 = vmatprep.subr.bf16.mxu0 0
        %343 = vmatpush1.bf16.xpose.msra.mxu0 0
        %344 = vmatprep.subr.bf16.mxu0 0
        %345 = vmatpush1.bf16.xpose.msra.mxu0 0
        %346 = vmatprep.subr.bf16.mxu0 0
        %347 = vmatpush1.bf16.xpose.msra.mxu0 0
        %348 = vmatprep.subr.bf16.mxu0 0
        %349 = vmatpush1.bf16.xpose.msra.mxu0 0
        %350 = vmatprep.subr.bf16.mxu0 0
        %351 = vmatpush1.bf16.xpose.msra.mxu0 0
        %352 = vmatprep.subr.bf16.mxu0 0
        %353 = vmatpush1.bf16.xpose.msra.mxu0 0
        %354 = vmatprep.subr.bf16.mxu0 0
        %355 = vmatpush1.bf16.xpose.msra.mxu0 0
        %356 = vmatprep.subr.bf16.mxu0 0
        %357 = vmatpush1.bf16.xpose.msra.mxu0 0
        %358 = vmatprep.subr.bf16.mxu0 0
        %359 = vmatpush1.bf16.xpose.msra.mxu0 0
        %360 = vmatprep.subr.bf16.mxu0 0
        %361 = vmatpush1.bf16.xpose.msra.mxu0 0
        %362 = vmatprep.mubr.bf16.mxu0 0
        %363 = vmatmul.mubr.bf16.gmra.mrb[0].mxu0 %v325
        %v364 = vpop.f32.mrb[0].mxu0
        %v365 = vadd.f32 %v318, %v364
        %v366 = vpop.f32.mrb[0].mxu0
        %v367 = vpop.f32.mrb[0].mxu0
        %v368 = vpop.f32.mrb[0].mxu0
        %369 = vdwg.mxu0
        %v370 = vsel %vm323, %v365, -inf
        %371 = vmax.xlane.f32.xlu0 %v370
        %v372 = vpop.xlane.xlu0 %371
        %v373 = vsub.f32 %v365, %v372
        %v374 = vmul.f32 %v373, 1.442695
        %v375 = vpow.pop %v374
        %v376 = vsel %vm323, %v375, 0.0
        %377 = vadd.xlane.f32.xlu0 %v376
        %v378 = vpop.xlane.xlu0 %377
        %v379 = vrcp.pop %v378
        %v380 = vmul.f32 %v375, %v379
        %v381 = vpack.c.bf16 %v380, %v380
        %382 = vrot.lane.b32.xlu0 %v313, 64
        %v383 = vpop.permute.xlu0 %382
        %v385 = vsel %vm323, %v381, 0
        %vm387 = vcmask 1043456
        %v389 = vsel %vm387, %v383, 0
        %391 = vmatprep.subr.bf16.mxu0 0
        %392 = vmatpush1.bf16.msra.mxu0 %v389
        %393 = vmatprep.subr.bf16.mxu0 0
        %394 = vmatpush1.bf16.msra.mxu0 0
        %395 = vmatprep.subr.bf16.mxu0 0
        %396 = vmatpush1.bf16.msra.mxu0 0
        %397 = vmatprep.subr.bf16.mxu0 0
        %398 = vmatpush1.bf16.msra.mxu0 0
        %399 = vmatprep.subr.bf16.mxu0 0
        %400 = vmatpush1.bf16.msra.mxu0 0
        %401 = vmatprep.subr.bf16.mxu0 0
        %402 = vmatpush1.bf16.msra.mxu0 0
        %403 = vmatprep.subr.bf16.mxu0 0
        %404 = vmatpush1.bf16.msra.mxu0 0
        %405 = vmatprep.subr.bf16.mxu0 0
        %406 = vmatpush1.bf16.msra.mxu0 0
        %407 = vmatprep.subr.bf16.mxu0 0
        %408 = vmatpush1.bf16.msra.mxu0 0
        %409 = vmatprep.subr.bf16.mxu0 0
        %410 = vmatpush1.bf16.msra.mxu0 0
        %411 = vmatprep.subr.bf16.mxu0 0
        %412 = vmatpush1.bf16.msra.mxu0 0
        %413 = vmatprep.subr.bf16.mxu0 0
        %414 = vmatpush1.bf16.msra.mxu0 0
        %415 = vmatprep.subr.bf16.mxu0 0
        %416 = vmatpush1.bf16.msra.mxu0 0
        %417 = vmatprep.subr.bf16.mxu0 0
        %418 = vmatpush1.bf16.msra.mxu0 0
        %419 = vmatprep.subr.bf16.mxu0 0
        %420 = vmatpush1.bf16.msra.mxu0 0
        %421 = vmatprep.subr.bf16.mxu0 0
        %422 = vmatpush1.bf16.msra.mxu0 0
        %423 = vmatprep.mubr.bf16.mxu0 0
        %424 = vmatmul.mubr.bf16.gmra.mrb[0].mxu0 %v385
        %v425 = vpop.f32.mrb[0].mxu0
        %v426 = vadd.f32 0.0, %v425
        %v427 = vpop.f32.mrb[0].mxu0
        %v428 = vpop.f32.mrb[0].mxu0
        %v429 = vpop.f32.mrb[0].mxu0
        %430 = vdwg.mxu0
        %431 = vrot.lane.b32.xlu0 %v313, 120
        %v432 = vpop.permute.xlu0 %431
        %433 = vrot.lane.b32.xlu0 %v313, 88
        %v434 = vpop.permute.xlu0 %433
        %v436 = vsel %vm323, %v432, 0
        %v439 = vsel %vm323, %v434, 0
        %441 = vmatprep.subr.bf16.mxu0 0
        %442 = vmatpush1.bf16.xpose.msra.mxu0 %v439
        %443 = vmatprep.subr.bf16.mxu0 0
        %444 = vmatpush1.bf16.xpose.msra.mxu0 0
        %445 = vmatprep.subr.bf16.mxu0 0
        %446 = vmatpush1.bf16.xpose.msra.mxu0 0
        %447 = vmatprep.subr.bf16.mxu0 0
        %448 = vmatpush1.bf16.xpose.msra.mxu0 0
        %449 = vmatprep.subr.bf16.mxu0 0
        %450 = vmatpush1.bf16.xpose.msra.mxu0 0
        %451 = vmatprep.subr.bf16.mxu0 0
        %452 = vmatpush1.bf16.xpose.msra.mxu0 0
        %453 = vmatprep.subr.bf16.mxu0 0
        %454 = vmatpush1.bf16.xpose.msra.mxu0 0
        %455 = vmatprep.subr.bf16.mxu0 0
        %456 = vmatpush1.bf16.xpose.msra.mxu0 0
        %457 = vmatprep.subr.bf16.mxu0 0
        %458 = vmatpush1.bf16.xpose.msra.mxu0 0
        %459 = vmatprep.subr.bf16.mxu0 0
        %460 = vmatpush1.bf16.xpose.msra.mxu0 0
        %461 = vmatprep.subr.bf16.mxu0 0
        %462 = vmatpush1.bf16.xpose.msra.mxu0 0
        %463 = vmatprep.subr.bf16.mxu0 0
        %464 = vmatpush1.bf16.xpose.msra.mxu0 0
        %465 = vmatprep.subr.bf16.mxu0 0
        %466 = vmatpush1.bf16.xpose.msra.mxu0 0
        %467 = vmatprep.subr.bf16.mxu0 0
        %468 = vmatpush1.bf16.xpose.msra.mxu0 0
        %469 = vmatprep.subr.bf16.mxu0 0
        %470 = vmatpush1.bf16.xpose.msra.mxu0 0
        %471 = vmatprep.subr.bf16.mxu0 0
        %472 = vmatpush1.bf16.xpose.msra.mxu0 0
        %473 = vmatprep.mubr.bf16.mxu0 0
        %474 = vmatmul.mubr.bf16.gmra.mrb[0].mxu0 %v436
        %v475 = vpop.f32.mrb[0].mxu0
        %v476 = vadd.f32 %v318, %v475
        %v477 = vpop.f32.mrb[0].mxu0
        %v478 = vpop.f32.mrb[0].mxu0
        %v479 = vpop.f32.mrb[0].mxu0
        %480 = vdwg.mxu0
        %v481 = vsel %vm323, %v476, -inf
        %482 = vmax.xlane.f32.xlu0 %v481
        %v483 = vpop.xlane.xlu0 %482
        %v484 = vsub.f32 %v476, %v483
        %v485 = vmul.f32 %v484, 1.442695
        %v486 = vpow.pop %v485
        %v487 = vsel %vm323, %v486, 0.0
        %488 = vadd.xlane.f32.xlu0 %v487
        %v489 = vpop.xlane.xlu0 %488
        %v490 = vrcp.pop %v489
        %v491 = vmul.f32 %v486, %v490
        %v492 = vpack.c.bf16 %v491, %v491
        %493 = vrot.lane.b32.xlu0 %v313, 56
        %v494 = vpop.permute.xlu0 %493
        %v496 = vsel %vm323, %v492, 0
        %v499 = vsel %vm387, %v494, 0
        %501 = vmatprep.subr.bf16.mxu0 0
        %502 = vmatpush1.bf16.msra.mxu0 %v499
        %503 = vmatprep.subr.bf16.mxu0 0
        %504 = vmatpush1.bf16.msra.mxu0 0
        %505 = vmatprep.subr.bf16.mxu0 0
        %506 = vmatpush1.bf16.msra.mxu0 0
        %507 = vmatprep.subr.bf16.mxu0 0
        %508 = vmatpush1.bf16.msra.mxu0 0
        %509 = vmatprep.subr.bf16.mxu0 0
        %510 = vmatpush1.bf16.msra.mxu0 0
        %511 = vmatprep.subr.bf16.mxu0 0
        %512 = vmatpush1.bf16.msra.mxu0 0
        %513 = vmatprep.subr.bf16.mxu0 0
        %514 = vmatpush1.bf16.msra.mxu0 0
        %515 = vmatprep.subr.bf16.mxu0 0
        %516 = vmatpush1.bf16.msra.mxu0 0
        %517 = vmatprep.subr.bf16.mxu0 0
        %518 = vmatpush1.bf16.msra.mxu0 0
        %519 = vmatprep.subr.bf16.mxu0 0
        %520 = vmatpush1.bf16.msra.mxu0 0
        %521 = vmatprep.subr.bf16.mxu0 0
        %522 = vmatpush1.bf16.msra.mxu0 0
        %523 = vmatprep.subr.bf16.mxu0 0
        %524 = vmatpush1.bf16.msra.mxu0 0
        %525 = vmatprep.subr.bf16.mxu0 0
        %526 = vmatpush1.bf16.msra.mxu0 0
        %527 = vmatprep.subr.bf16.mxu0 0
        %528 = vmatpush1.bf16.msra.mxu0 0
        %529 = vmatprep.subr.bf16.mxu0 0
        %530 = vmatpush1.bf16.msra.mxu0 0
        %531 = vmatprep.subr.bf16.mxu0 0
        %532 = vmatpush1.bf16.msra.mxu0 0
        %533 = vmatprep.mubr.bf16.mxu0 0
        %534 = vmatmul.mubr.bf16.gmra.mrb[0].mxu0 %v496
        %v535 = vpop.f32.mrb[0].mxu0
        %v536 = vadd.f32 0.0, %v535
        %v537 = vpop.f32.mrb[0].mxu0
        %v538 = vpop.f32.mrb[0].mxu0
        %v539 = vpop.f32.mrb[0].mxu0
        %540 = vdwg.mxu0
        %541 = vrot.lane.b32.xlu0 %v313, 112
        %v542 = vpop.permute.xlu0 %541
        %543 = vrot.lane.b32.xlu0 %v313, 80
        %v544 = vpop.permute.xlu0 %543
        %v546 = vsel %vm323, %v542, 0
        %v549 = vsel %vm323, %v544, 0
        %551 = vmatprep.subr.bf16.mxu0 0
        %552 = vmatpush1.bf16.xpose.msra.mxu0 %v549
        %553 = vmatprep.subr.bf16.mxu0 0
        %554 = vmatpush1.bf16.xpose.msra.mxu0 0
        %555 = vmatprep.subr.bf16.mxu0 0
        %556 = vmatpush1.bf16.xpose.msra.mxu0 0
        %557 = vmatprep.subr.bf16.mxu0 0
        %558 = vmatpush1.bf16.xpose.msra.mxu0 0
        %559 = vmatprep.subr.bf16.mxu0 0
        %560 = vmatpush1.bf16.xpose.msra.mxu0 0
        %561 = vmatprep.subr.bf16.mxu0 0
        %562 = vmatpush1.bf16.xpose.msra.mxu0 0
        %563 = vmatprep.subr.bf16.mxu0 0
        %564 = vmatpush1.bf16.xpose.msra.mxu0 0
        %565 = vmatprep.subr.bf16.mxu0 0
        %566 = vmatpush1.bf16.xpose.msra.mxu0 0
        %567 = vmatprep.subr.bf16.mxu0 0
        %568 = vmatpush1.bf16.xpose.msra.mxu0 0
        %569 = vmatprep.subr.bf16.mxu0 0
        %570 = vmatpush1.bf16.xpose.msra.mxu0 0
        %571 = vmatprep.subr.bf16.mxu0 0
        %572 = vmatpush1.bf16.xpose.msra.mxu0 0
        %573 = vmatprep.subr.bf16.mxu0 0
        %574 = vmatpush1.bf16.xpose.msra.mxu0 0
        %575 = vmatprep.subr.bf16.mxu0 0
        %576 = vmatpush1.bf16.xpose.msra.mxu0 0
        %577 = vmatprep.subr.bf16.mxu0 0
        %578 = vmatpush1.bf16.xpose.msra.mxu0 0
        %579 = vmatprep.subr.bf16.mxu0 0
        %580 = vmatpush1.bf16.xpose.msra.mxu0 0
        %581 = vmatprep.subr.bf16.mxu0 0
        %582 = vmatpush1.bf16.xpose.msra.mxu0 0
        %583 = vmatprep.mubr.bf16.mxu0 0
        %584 = vmatmul.mubr.bf16.gmra.mrb[0].mxu0 %v546
        %v585 = vpop.f32.mrb[0].mxu0
        %v586 = vadd.f32 %v318, %v585
        %v587 = vpop.f32.mrb[0].mxu0
        %v588 = vpop.f32.mrb[0].mxu0
        %v589 = vpop.f32.mrb[0].mxu0
        %590 = vdwg.mxu0
        %v591 = vsel %vm323, %v586, -inf
        %592 = vmax.xlane.f32.xlu0 %v591
        %v593 = vpop.xlane.xlu0 %592
        %v594 = vsub.f32 %v586, %v593
        %v595 = vmul.f32 %v594, 1.442695
        %v596 = vpow.pop %v595
        %v597 = vsel %vm323, %v596, 0.0
        %598 = vadd.xlane.f32.xlu0 %v597
        %v599 = vpop.xlane.xlu0 %598
        %v600 = vrcp.pop %v599
        %v601 = vmul.f32 %v596, %v600
        %v602 = vpack.c.bf16 %v601, %v601
        %603 = vrot.lane.b32.xlu0 %v313, 48
        %v604 = vpop.permute.xlu0 %603
        %v606 = vsel %vm323, %v602, 0
        %v609 = vsel %vm387, %v604, 0
        %611 = vmatprep.subr.bf16.mxu0 0
        %612 = vmatpush1.bf16.msra.mxu0 %v609
        %613 = vmatprep.subr.bf16.mxu0 0
        %614 = vmatpush1.bf16.msra.mxu0 0
        %615 = vmatprep.subr.bf16.mxu0 0
        %616 = vmatpush1.bf16.msra.mxu0 0
        %617 = vmatprep.subr.bf16.mxu0 0
        %618 = vmatpush1.bf16.msra.mxu0 0
        %619 = vmatprep.subr.bf16.mxu0 0
        %620 = vmatpush1.bf16.msra.mxu0 0
        %621 = vmatprep.subr.bf16.mxu0 0
        %622 = vmatpush1.bf16.msra.mxu0 0
        %623 = vmatprep.subr.bf16.mxu0 0
        %624 = vmatpush1.bf16.msra.mxu0 0
        %625 = vmatprep.subr.bf16.mxu0 0
        %626 = vmatpush1.bf16.msra.mxu0 0
        %627 = vmatprep.subr.bf16.mxu0 0
        %628 = vmatpush1.bf16.msra.mxu0 0
        %629 = vmatprep.subr.bf16.mxu0 0
        %630 = vmatpush1.bf16.msra.mxu0 0
        %631 = vmatprep.subr.bf16.mxu0 0
        %632 = vmatpush1.bf16.msra.mxu0 0
        %633 = vmatprep.subr.bf16.mxu0 0
        %634 = vmatpush1.bf16.msra.mxu0 0
        %635 = vmatprep.subr.bf16.mxu0 0
        %636 = vmatpush1.bf16.msra.mxu0 0
        %637 = vmatprep.subr.bf16.mxu0 0
        %638 = vmatpush1.bf16.msra.mxu0 0
        %639 = vmatprep.subr.bf16.mxu0 0
        %640 = vmatpush1.bf16.msra.mxu0 0
        %641 = vmatprep.subr.bf16.mxu0 0
        %642 = vmatpush1.bf16.msra.mxu0 0
        %643 = vmatprep.mubr.bf16.mxu0 0
        %644 = vmatmul.mubr.bf16.gmra.mrb[0].mxu0 %v606
        %v645 = vpop.f32.mrb[0].mxu0
        %v646 = vadd.f32 0.0, %v645
        %v647 = vpop.f32.mrb[0].mxu0
        %v648 = vpop.f32.mrb[0].mxu0
        %v649 = vpop.f32.mrb[0].mxu0
        %650 = vdwg.mxu0
        %651 = vrot.lane.b32.xlu0 %v313, 104
        %v652 = vpop.permute.xlu0 %651
        %653 = vrot.lane.b32.xlu0 %v313, 72
        %v654 = vpop.permute.xlu0 %653
        %v656 = vsel %vm323, %v652, 0
        %v659 = vsel %vm323, %v654, 0
        %661 = vmatprep.subr.bf16.mxu0 0
        %662 = vmatpush1.bf16.xpose.msra.mxu0 %v659
        %663 = vmatprep.subr.bf16.mxu0 0
        %664 = vmatpush1.bf16.xpose.msra.mxu0 0
        %665 = vmatprep.subr.bf16.mxu0 0
        %666 = vmatpush1.bf16.xpose.msra.mxu0 0
        %667 = vmatprep.subr.bf16.mxu0 0
        %668 = vmatpush1.bf16.xpose.msra.mxu0 0
        %669 = vmatprep.subr.bf16.mxu0 0
        %670 = vmatpush1.bf16.xpose.msra.mxu0 0
        %671 = vmatprep.subr.bf16.mxu0 0
        %672 = vmatpush1.bf16.xpose.msra.mxu0 0
        %673 = vmatprep.subr.bf16.mxu0 0
        %674 = vmatpush1.bf16.xpose.msra.mxu0 0
        %675 = vmatprep.subr.bf16.mxu0 0
        %676 = vmatpush1.bf16.xpose.msra.mxu0 0
        %677 = vmatprep.subr.bf16.mxu0 0
        %678 = vmatpush1.bf16.xpose.msra.mxu0 0
        %679 = vmatprep.subr.bf16.mxu0 0
        %680 = vmatpush1.bf16.xpose.msra.mxu0 0
        %681 = vmatprep.subr.bf16.mxu0 0
        %682 = vmatpush1.bf16.xpose.msra.mxu0 0
        %683 = vmatprep.subr.bf16.mxu0 0
        %684 = vmatpush1.bf16.xpose.msra.mxu0 0
        %685 = vmatprep.subr.bf16.mxu0 0
        %686 = vmatpush1.bf16.xpose.msra.mxu0 0
        %687 = vmatprep.subr.bf16.mxu0 0
        %688 = vmatpush1.bf16.xpose.msra.mxu0 0
        %689 = vmatprep.subr.bf16.mxu0 0
        %690 = vmatpush1.bf16.xpose.msra.mxu0 0
        %691 = vmatprep.subr.bf16.mxu0 0
        %692 = vmatpush1.bf16.xpose.msra.mxu0 0
        %693 = vmatprep.mubr.bf16.mxu0 0
        %694 = vmatmul.mubr.bf16.gmra.mrb[0].mxu0 %v656
        %v695 = vpop.f32.mrb[0].mxu0
        %v696 = vadd.f32 %v318, %v695
        %v697 = vpop.f32.mrb[0].mxu0
        %v698 = vpop.f32.mrb[0].mxu0
        %v699 = vpop.f32.mrb[0].mxu0
        %700 = vdwg.mxu0
        %v701 = vsel %vm323, %v696, -inf
        %702 = vmax.xlane.f32.xlu0 %v701
        %v703 = vpop.xlane.xlu0 %702
        %v704 = vsub.f32 %v696, %v703
        %v705 = vmul.f32 %v704, 1.442695
        %v706 = vpow.pop %v705
        %v707 = vsel %vm323, %v706, 0.0
        %708 = vadd.xlane.f32.xlu0 %v707
        %v709 = vpop.xlane.xlu0 %708
        %v710 = vrcp.pop %v709
        %v711 = vmul.f32 %v706, %v710
        %v712 = vpack.c.bf16 %v711, %v711
        %713 = vrot.lane.b32.xlu0 %v313, 40
        %v714 = vpop.permute.xlu0 %713
        %v716 = vsel %vm323, %v712, 0
        %v719 = vsel %vm387, %v714, 0
        %721 = vmatprep.subr.bf16.mxu0 0
        %722 = vmatpush1.bf16.msra.mxu0 %v719
        %723 = vmatprep.subr.bf16.mxu0 0
        %724 = vmatpush1.bf16.msra.mxu0 0
        %725 = vmatprep.subr.bf16.mxu0 0
        %726 = vmatpush1.bf16.msra.mxu0 0
        %727 = vmatprep.subr.bf16.mxu0 0
        %728 = vmatpush1.bf16.msra.mxu0 0
        %729 = vmatprep.subr.bf16.mxu0 0
        %730 = vmatpush1.bf16.msra.mxu0 0
        %731 = vmatprep.subr.bf16.mxu0 0
        %732 = vmatpush1.bf16.msra.mxu0 0
        %733 = vmatprep.subr.bf16.mxu0 0
        %734 = vmatpush1.bf16.msra.mxu0 0
        %735 = vmatprep.subr.bf16.mxu0 0
        %736 = vmatpush1.bf16.msra.mxu0 0
        %737 = vmatprep.subr.bf16.mxu0 0
        %738 = vmatpush1.bf16.msra.mxu0 0
        %739 = vmatprep.subr.bf16.mxu0 0
        %740 = vmatpush1.bf16.msra.mxu0 0
        %741 = vmatprep.subr.bf16.mxu0 0
        %742 = vmatpush1.bf16.msra.mxu0 0
        %743 = vmatprep.subr.bf16.mxu0 0
        %744 = vmatpush1.bf16.msra.mxu0 0
        %745 = vmatprep.subr.bf16.mxu0 0
        %746 = vmatpush1.bf16.msra.mxu0 0
        %747 = vmatprep.subr.bf16.mxu0 0
        %748 = vmatpush1.bf16.msra.mxu0 0
        %749 = vmatprep.subr.bf16.mxu0 0
        %750 = vmatpush1.bf16.msra.mxu0 0
        %751 = vmatprep.subr.bf16.mxu0 0
        %752 = vmatpush1.bf16.msra.mxu0 0
        %753 = vmatprep.mubr.bf16.mxu0 0
        %754 = vmatmul.mubr.bf16.gmra.mrb[0].mxu0 %v716
        %v755 = vpop.f32.mrb[0].mxu0
        %v756 = vadd.f32 0.0, %v755
        %v757 = vpop.f32.mrb[0].mxu0
        %v758 = vpop.f32.mrb[0].mxu0
        %v759 = vpop.f32.mrb[0].mxu0
        %760 = vdwg.mxu0
        %762 = vrot.lane.b32.xlu0 %v536, 8
        %v763 = vpop.permute.xlu0 %762
        %766 = vrot.lane.b32.xlu0 %v646, 16
        %v767 = vpop.permute.xlu0 %766
        %770 = vrot.lane.b32.xlu0 %v756, 24
        %v771 = vpop.permute.xlu0 %770
        %v773 = vsel %vm323, %v426, %v763
        %vm774 = vcmask 130048
        %v775 = vsel %vm774, %v773, %v767
        %vm776 = vcmask 195584
        %v777 = vsel %vm776, %v775, %v771
        %778 = vst.msk [vmem:[%s238] sm:$0xff] %vm268, %v777
        %s779 = sand.u32 %s124, 1
        %s780 = scalar_lea.sflag [#allocation4], %s779
        %s781 = sand.u32 %s124, 1
        %s782 = smul.addr %s781, 8
        %s783 = scalar_lea.vmem [#allocation7], %s782
        // Predicated region
        $region45: #{tpu_custom_call.1} parent=35 // pred_check
          %p784 = pneg %p134
        $region46: #{tpu_custom_call.1} parent=35 // pred_check_branch
          %786 = sbr.rel (%p784) target = $region48
        $region47: #{tpu_custom_call.1} parent=35 // pred_region
          %s788 = ssub.s32 128, 128
          %789 = vsyncadd %s780, %s788
          %s790 = smul.addr %s22, 128
          %s791 = scalar_lea.hbm %s4, %s790
          %s793 = sshll.u32 %s783, 4
          %s794 = int_to_ptr.vmem [resolvable:$true] %s793
          %796 = dma.vmem_to_hbm [thread:$0]  %s794, 128, %s791, %s780
        $region48: #{tpu_custom_call.1} parent=35 // pred_fallthru
          _
      $region36: #{tpu_custom_call.1} parent=5 // pred_fallthru
        _
      %p797 = scmp.le.s32.totalorder 2, %s17
      // Predicated region
      $region49: #{tpu_custom_call.1} parent=5 // pred_check
        %p798 = pneg %p797
      $region50: #{tpu_custom_call.1} parent=5 // pred_check_branch
        %800 = sbr.rel (%p798) target = $region52
      $region51: #{tpu_custom_call.1} parent=5 // pred_region
        %s801 = ssub.s32 %s17, 2
        // Predicated region
        $region53: #{tpu_custom_call.1} parent=51 // pred_check
          %p802 = pneg %p140
        $region54: #{tpu_custom_call.1} parent=51 // pred_check_branch
          %804 = sbr.rel (%p802) target = $region56
        $region55: #{tpu_custom_call.1} parent=51 // pred_region
          %s805 = sand.u32 %s125, 1
          %s806 = scalar_lea.sflag [#allocation4], %s805
          %s807 = sand.u32 %s125, 1
          %s808 = smul.addr %s807, 8
          %s809 = scalar_lea.vmem [#allocation7], %s808
          %810 = dma.done %s806, 128
        $region56: #{tpu_custom_call.1} parent=51 // pred_fallthru
          _
      $region52: #{tpu_custom_call.1} parent=5 // pred_fallthru
        _
    $region6: #{tpu_custom_call.1} parent=1 // loop_footer
      %s21 = sadd.s32 1, %s17
    $region7: #{tpu_custom_call.1} parent=1 // loop_footer_branch
      %16 = sbr.rel target = $region3
    $region8: #{tpu_custom_call.1} parent=1 // loop_exit
      _
    %811 = vsyncpa [#allocation3], 1
    %s812 = scalar_lea.sflag [#allocation3], 1
    %813 = vsyncpa %s812, 1
    %814 = vsyncpa [#allocation6], 1
    %815 = vsyncpa [#allocation4], 1
    %s816 = scalar_lea.sflag [#allocation4], 1
    %817 = vsyncpa %s816, 1

</llo_original>
